<compile_context>
chip_gen: v7x
topology: tpu7x:2x2x1
jax: 0.10.0
libtpu: 0.0.40
codegen_flags: <defaults>
</compile_context>

<pallas_src>
import functools

import jax
import jax.numpy as jnp
from jax.experimental import pallas as pl
from jax.experimental.pallas import tpu as pltpu

_BN_EPS = 1e-5
_LANE = 128
_TS_CAP = 131072          # hard cap on spatial tile (lanes) per grid step
_NUM_SPLITS = 2           # leading "parallel" axis (covers v7x's 2 TensorCores)
_UNROLL = 4               # chunk-loop unroll (bounds vreg live ranges)


def _vmem_plan():
    """Generation-aware scoped-VMEM limit and input double-buffer budget."""
    cap = 64 * 1024 * 1024                         # conservative fallback
    try:
        cap = int(getattr(pltpu.get_tpu_info(), "vmem_capacity_bytes", cap))
    except Exception:
        pass
    cap = max(32 * 1024 * 1024, min(cap, 128 * 1024 * 1024))
    # 3/4 of physical, never above 96 MiB: ~48 MiB on v7x, ~96 MiB on v5e/v6e.
    limit = min((cap * 3) // 4, 96 * 1024 * 1024)
    pipe_budget = max(limit - 4 * 1024 * 1024, 8 * 1024 * 1024)
    return limit, pipe_budget


def _choose_spatial_tile(B, C, S, itemsize, pipe_budget):
    """Largest lane-aligned spatial tile whose double-buffered input block fits
    the VMEM budget, preferring an exact divisor of S so no grid step ever
    needs the ragged-mask path."""
    budget_ts = pipe_budget // (2 * B * C * itemsize)      # 2x: double-buffer
    cap = max(_LANE, min(_TS_CAP, (budget_ts // _LANE) * _LANE))
    if S <= cap:
        return S                     # one step per split; full-dim block legal
    best, t = 0, cap
    while t >= _LANE:                # prefer a divisor of S (no masking)
        if S % t == 0:
            best = t
            break
        t -= _LANE
    if best >= cap // 2:
        return best
    return cap                       # ragged last block, masked exactly once


def _accum_chunks(feats_ref, acc, n_chunks, acc_w, unroll):
    """Lane-dense VPU accumulation; f32 accumulate regardless of input dtype."""
    def body(j, a):
        off = pl.multiple_of(j * acc_w, acc_w)
        return a + feats_ref[:, :, pl.ds(off, acc_w)].astype(jnp.float32)
    return jax.lax.fori_loop(0, n_chunks, body, acc,
                             unroll=max(1, min(unroll, n_chunks)))


# ----------------------------------------------------------------------------
# Stage 1: streaming AdaptiveAvgPool3d partial sums (per split).
# ----------------------------------------------------------------------------
def _pool_partial_kernel(feats_ref, part_ref, acc_ref, *, t_s, acc_w,
                         n_steps, total_steps, rem, guard_pad, unroll):
    s = pl.program_id(0)
    k = pl.program_id(1)
    g = s * n_steps + k                       # global spatial step index

    @pl.when(k == 0)
    def _():
        acc_ref[...] = jnp.zeros_like(acc_ref)

    n_chunks = t_s // acc_w

    def unmasked():
        acc_ref[...] = _accum_chunks(feats_ref, acc_ref[...], n_chunks,
                                     acc_w, unroll)

    if rem == 0:
        if guard_pad:
            # Only padded trailing steps (g >= total_steps) are skipped.
            pl.when(g < total_steps)(unmasked)
        else:
            unmasked()                         # common case: zero masking cost
    else:
        pl.when(g < total_steps - 1)(unmasked)

        @pl.when(g == total_steps - 1)
        def _():
            # Only the final block is ragged: chunks fully inside [0, rem) are
            # unmasked, the single straddling chunk is select-masked, chunks
            # fully past rem are skipped.  All decided statically.
            n_full = rem // acc_w
            tail = rem - n_full * acc_w
            acc = acc_ref[...]
            if n_full > 0:
                acc = _accum_chunks(feats_ref, acc, n_full, acc_w, unroll)
            if tail > 0:
                lane = jax.lax.broadcasted_iota(jnp.int32, (1, 1, acc_w), 2)
                chunk = feats_ref[:, :, pl.ds(n_full * acc_w, acc_w)]
                acc = acc + jnp.where(lane < tail,
                                      chunk.astype(jnp.float32), 0.0)
            acc_ref[...] = acc

    @pl.when(k == n_steps - 1)
    def _():
        # Single cross-lane (XLU) reduction per split, deferred to the end.
        part_ref[...] = jnp.sum(acc_ref[...], axis=-1)[None, :, :]


# ----------------------------------------------------------------------------
# Stage 2: combine partials + Linear(24,12) -> ReLU -> BatchNorm1d -> Linear(12,2)
# ----------------------------------------------------------------------------
def _head_kernel(part_ref, w1_ref, b1_ref, gamma_ref, beta_ref,
                 w2_ref, b2_ref, out_ref, *, inv_s):
    pooled = jnp.sum(part_ref[...], axis=0) * inv_s                 # (B, C)
    h = jnp.dot(pooled, w1_ref[...], preferred_element_type=jnp.float32)
    h = jnp.maximum(h + b1_ref[...], 0.0)
    # BatchNorm1d(12): training-mode batch statistics, biased variance.
    # TODO(synk): eval-mode would use running_mean/running_var constants.
    mu = jnp.mean(h, axis=0, keepdims=True)
    var = jnp.mean((h - mu) ** 2, axis=0, keepdims=True)
    hn = (h - mu) * jax.lax.rsqrt(var + _BN_EPS)
    hn = hn * gamma_ref[...] + beta_ref[...]
    out_ref[...] = (jnp.dot(hn, w2_ref[...],
                            preferred_element_type=jnp.float32) + b2_ref[...])


def swin_classifier_head(feats, params, *, spatial_tile=None,
                         num_splits=_NUM_SPLITS):
    """feats: (B, 24, D, H, W) decoder1 feature map. f32 or bf16 (bf16 halves
    HBM traffic; accumulation is f32 either way)."""
    B, C, D, H, W = feats.shape
    S = D * H * W
    f = feats.reshape(B, C, S)                  # contiguous: no HBM copy
    vmem_limit, pipe_budget = _vmem_plan()

    if spatial_tile is None:
        tS = _choose_spatial_tile(B, C, S, f.dtype.itemsize, pipe_budget)
    else:
        tS = min(int(spatial_tile), S)
        assert tS == S or tS % _LANE == 0, "spatial tile must be lane-aligned"

    total_steps = pl.cdiv(S, tS)
    n_split = max(1, min(int(num_splits), total_steps))
    n_steps = pl.cdiv(total_steps, n_split)
    guard_pad = (n_split * n_steps != total_steps)
    rem = S % tS
    # Accumulator lane width: widest of {512, 256, 128} that divides the tile.
    acc_w = next((w for w in (512, 256, _LANE) if tS % w == 0), tS)
    last_block = total_steps - 1

    kernel = functools.partial(
        _pool_partial_kernel, t_s=tS, acc_w=acc_w, n_steps=n_steps,
        total_steps=total_steps, rem=rem, guard_pad=guard_pad, unroll=_UNROLL)

    partials = pl.pallas_call(
        kernel,
        out_shape=jax.ShapeDtypeStruct((n_split, B, C), jnp.float32),
        grid_spec=pltpu.PrefetchScalarGridSpec(
            num_scalar_prefetch=0,
            grid=(n_split, n_steps),
            in_specs=[pl.BlockSpec(
                (B, C, tS),
                # Padded trailing steps clamp onto the last valid block; their
                # compute is skipped in-kernel, so the re-read contributes 0.
                lambda s, k: (0, 0, jnp.minimum(s * n_steps + k, last_block)))],
            out_specs=pl.BlockSpec((1, B, C), lambda s, k: (s, 0, 0)),
            scratch_shapes=[pltpu.VMEM((B, C, acc_w), jnp.float32)],
        ),
        compiler_params=pltpu.CompilerParams(
            dimension_semantics=("parallel", "arbitrary"),
            vmem_limit_bytes=vmem_limit,
        ),
        cost_estimate=pl.CostEstimate(
            flops=B * C * S, transcendentals=0,
            bytes_accessed=f.size * f.dtype.itemsize + n_split * B * C * 4),
    )(f)

    w1, b1 = params["w1"], params["b1"]
    gamma, beta = params["gamma"], params["beta"]
    w2, b2 = params["w2"], params["b2"]
    const_spec = lambda a: pl.BlockSpec(a.shape, lambda i, _n=a.ndim: (0,) * _n)

    return pl.pallas_call(
        functools.partial(_head_kernel, inv_s=1.0 / S),
        out_shape=jax.ShapeDtypeStruct((B, 2), jnp.float32),
        grid_spec=pltpu.PrefetchScalarGridSpec(
            num_scalar_prefetch=0,
            grid=(1,),
            in_specs=[pl.BlockSpec((n_split, B, C), lambda i: (0, 0, 0)),
                      const_spec(w1), const_spec(b1),
                      const_spec(gamma), const_spec(beta),
                      const_spec(w2), const_spec(b2)],
            out_specs=pl.BlockSpec((B, 2), lambda i: (0, 0)),
        ),
        compiler_params=pltpu.CompilerParams(
            dimension_semantics=("arbitrary",)),
    )(partials, w1, b1, gamma, beta, w2, b2)


# ----------------------------------------------------------------------------
# Deterministic parameter init (matches PyTorch shapes / default inits).
# ----------------------------------------------------------------------------
def init_params(key):
    k1, k2, k3, k4 = jax.random.split(key, 4)
    lim1 = 1.0 / jnp.sqrt(24.0)
    lim2 = 1.0 / jnp.sqrt(12.0)
    return {
        # stored transposed relative to torch (in_features, out_features)
        "w1": jax.random.uniform(k1, (24, 12), jnp.float32, -lim1, lim1),
        "b1": jax.random.uniform(k2, (1, 12), jnp.float32, -lim1, lim1),
        "gamma": jnp.ones((1, 12), jnp.float32),   # BatchNorm1d weight
        "beta": jnp.zeros((1, 12), jnp.float32),   # BatchNorm1d bias
        "w2": jax.random.uniform(k3, (12, 2), jnp.float32, -lim2, lim2),
        "b2": jax.random.uniform(k4, (1, 2), jnp.float32, -lim2, lim2),
    }


def reference_head(feats, params):
    B, C = feats.shape[0], feats.shape[1]
    pooled = feats.reshape(B, C, -1).astype(jnp.float32).mean(-1)
    h = pooled @ params["w1"] + params["b1"]
    h = jnp.maximum(h, 0.0)
    mu = h.mean(0, keepdims=True)
    var = ((h - mu) ** 2).mean(0, keepdims=True)
    hn = (h - mu) / jnp.sqrt(var + _BN_EPS) * params["gamma"] + params["beta"]
    return hn @ params["w2"] + params["b2"]


if __name__ == "__main__":
    key = jax.random.PRNGKey(0)
    k_feat, k_feat2, k_par = jax.random.split(key, 3)

    # decoder1-feature-shaped input: (B=2, C=24, D=16, H=16, W=8) -> S=2048.
    feats = jax.random.normal(k_feat, (2, 24, 16, 16, 8), dtype=jnp.float32)
    params = init_params(k_par)
    ref = reference_head(feats, params)

    # 1) Default auto-tile (whole spatial extent in one step, single split).
    out = jax.block_until_ready(swin_classifier_head(feats, params))
    assert out.shape == (2, 2)
    assert jnp.allclose(out, ref, atol=1e-4, rtol=1e-4), (out, ref)

    # 2) Multi-step grid with 2 splits (exercises split-parallel accumulation).
    out2 = jax.block_until_ready(
        swin_classifier_head(feats, params, spatial_tile=256))
    assert jnp.allclose(out2, ref, atol=1e-4, rtol=1e-4), (out2, ref)

    # 3) Ragged final block + padded trailing grid step (3 blocks over 2 splits).
    out3 = jax.block_until_ready(
        swin_classifier_head(feats, params, spatial_tile=768))
    assert jnp.allclose(out3, ref, atol=1e-4, rtol=1e-4), (out3, ref)

    # 4) Non-lane-multiple spatial extent -> straddling masked chunk path.
    feats2 = jax.random.normal(k_feat2, (2, 24, 6, 12, 15), dtype=jnp.float32)
    ref2 = reference_head(feats2, params)
    out4 = jax.block_until_ready(
        swin_classifier_head(feats2, params, spatial_tile=128))
    assert jnp.allclose(out4, ref2, atol=1e-4, rtol=1e-4), (out4, ref2)

    # 5) bf16 features: half the HBM bytes; accumulation stays f32.
    feats_bf = feats.astype(jnp.bfloat16)
    ref_bf = reference_head(feats_bf, params)
    out5 = jax.block_until_ready(swin_classifier_head(feats_bf, params))
    assert jnp.allclose(out5, ref_bf, atol=1e-3, rtol=1e-3), (out5, ref_bf)

    print("KERNEL_OK")
</pallas_src>

<mosaic_0001>
module attributes {stable_mosaic.version = 11 : i64} {
  func.func @_pool_partial_kernel(%arg0: i32, %arg1: i32, %arg2: memref<2x24x2048xf32, #tpu.memory_space<vmem>>, %arg3: memref<1x2x24xf32, #tpu.memory_space<vmem>>, %arg4: memref<2x24x512xf32, #tpu.memory_space<vmem>>) attributes {dimension_semantics = [#tpu.dimension_semantics<parallel>, #tpu.dimension_semantics<arbitrary>], iteration_bounds = array<i64: 1, 1>, scalar_prefetch = 0 : i64, scratch_operands = 1 : i64, tpu.core_type = #tpu.core_type<tc>, window_params = [{transform_indices = @transform_0, window_bounds = array<i64: 2, 24, 2048>}, {transform_indices = @transform_1, window_bounds = array<i64: 1, 2, 24>}]} {
    %c0_i32 = arith.constant 0 : i32
    %0 = arith.cmpi eq, %arg1, %c0_i32 : i32
    %1 = arith.extui %0 : i1 to i32
    %c0_i32_0 = arith.constant 0 : i32
    %2 = arith.cmpi ne, %1, %c0_i32_0 : i32
    scf.if %2 {
      %cst = arith.constant 0.000000e+00 : f32
      %28 = vector.broadcast %cst : f32 to vector<2x24x512xf32>
      %c0_20 = arith.constant 0 : index
      %c0_21 = arith.constant 0 : index
      %c0_22 = arith.constant 0 : index
      %29 = vector.load %arg4[%c0_20, %c0_21, %c0_22] : memref<2x24x512xf32, #tpu.memory_space<vmem>>, vector<2x24x512xf32>
      tpu.vector_store %arg4[%c0_20, %c0_21, %c0_22], %28 {strides = array<i32>} : memref<2x24x512xf32, #tpu.memory_space<vmem>>, vector<2x24x512xf32>,
    } else {
    }
    %c0 = arith.constant 0 : index
    %c0_1 = arith.constant 0 : index
    %c0_2 = arith.constant 0 : index
    %3 = vector.load %arg4[%c0, %c0_1, %c0_2] : memref<2x24x512xf32, #tpu.memory_space<vmem>>, vector<2x24x512xf32>
    %c0_i32_3 = arith.constant 0 : i32
    %c512_i32 = arith.constant 512 : i32
    %4 = arith.muli %c0_i32_3, %c512_i32 : i32
    %5 = tpu.assume_multiple %4, 512 : i32
    %c0_4 = arith.constant 0 : index
    %c0_5 = arith.constant 0 : index
    %6 = arith.index_cast %5 : i32 to index
    %7 = vector.load %arg2[%c0_4, %c0_5, %6] : memref<2x24x2048xf32, #tpu.memory_space<vmem>>, vector<2x24x512xf32>
    %8 = arith.addf %3, %7 : vector<2x24x512xf32>
    %c1_i32 = arith.constant 1 : i32
    %c512_i32_6 = arith.constant 512 : i32
    %9 = arith.muli %c1_i32, %c512_i32_6 : i32
    %10 = tpu.assume_multiple %9, 512 : i32
    %c0_7 = arith.constant 0 : index
    %c0_8 = arith.constant 0 : index
    %11 = arith.index_cast %10 : i32 to index
    %12 = vector.load %arg2[%c0_7, %c0_8, %11] : memref<2x24x2048xf32, #tpu.memory_space<vmem>>, vector<2x24x512xf32>
    %13 = arith.addf %8, %12 : vector<2x24x512xf32>
    %c2_i32 = arith.constant 2 : i32
    %c512_i32_9 = arith.constant 512 : i32
    %14 = arith.muli %c2_i32, %c512_i32_9 : i32
    %15 = tpu.assume_multiple %14, 512 : i32
    %c0_10 = arith.constant 0 : index
    %c0_11 = arith.constant 0 : index
    %16 = arith.index_cast %15 : i32 to index
    %17 = vector.load %arg2[%c0_10, %c0_11, %16] : memref<2x24x2048xf32, #tpu.memory_space<vmem>>, vector<2x24x512xf32>
    %18 = arith.addf %13, %17 : vector<2x24x512xf32>
    %c3_i32 = arith.constant 3 : i32
    %c512_i32_12 = arith.constant 512 : i32
    %19 = arith.muli %c3_i32, %c512_i32_12 : i32
    %20 = tpu.assume_multiple %19, 512 : i32
    %c0_13 = arith.constant 0 : index
    %c0_14 = arith.constant 0 : index
    %21 = arith.index_cast %20 : i32 to index
    %22 = vector.load %arg2[%c0_13, %c0_14, %21] : memref<2x24x2048xf32, #tpu.memory_space<vmem>>, vector<2x24x512xf32>
    %23 = arith.addf %18, %22 : vector<2x24x512xf32>
    %c4_i32 = arith.constant 4 : i32
    %c0_15 = arith.constant 0 : index
    %c0_16 = arith.constant 0 : index
    %c0_17 = arith.constant 0 : index
    %24 = vector.load %arg4[%c0_15, %c0_16, %c0_17] : memref<2x24x512xf32, #tpu.memory_space<vmem>>, vector<2x24x512xf32>
    tpu.vector_store %arg4[%c0_15, %c0_16, %c0_17], %23 {strides = array<i32>} : memref<2x24x512xf32, #tpu.memory_space<vmem>>, vector<2x24x512xf32>,
    %c0_i32_18 = arith.constant 0 : i32
    %25 = arith.cmpi eq, %arg1, %c0_i32_18 : i32
    %26 = arith.extui %25 : i1 to i32
    %c0_i32_19 = arith.constant 0 : i32
    %27 = arith.cmpi ne, %26, %c0_i32_19 : i32
    scf.if %27 {
      %c0_20 = arith.constant 0 : index
      %c0_21 = arith.constant 0 : index
      %c0_22 = arith.constant 0 : index
      %28 = vector.load %arg4[%c0_20, %c0_21, %c0_22] : memref<2x24x512xf32, #tpu.memory_space<vmem>>, vector<2x24x512xf32>
      %cst = arith.constant dense<0.000000e+00> : vector<2x24xf32>
      %29 = vector.multi_reduction <add>, %28, %cst [2] : vector<2x24x512xf32> to vector<2x24xf32>
      %30 = vector.shape_cast %29 : vector<2x24xf32> to vector<1x2x24xf32>
      %c0_23 = arith.constant 0 : index
      %c0_24 = arith.constant 0 : index
      %c0_25 = arith.constant 0 : index
      %31 = vector.load %arg3[%c0_23, %c0_24, %c0_25] : memref<1x2x24xf32, #tpu.memory_space<vmem>>, vector<1x2x24xf32>
      tpu.vector_store %arg3[%c0_23, %c0_24, %c0_25], %30 {strides = array<i32>} : memref<1x2x24xf32, #tpu.memory_space<vmem>>, vector<1x2x24xf32>,
    } else {
    }
    return
  }
  func.func @transform_0(%arg0: i32, %arg1: i32) -> (i32, i32, i32) {
    %c1_i32 = arith.constant 1 : i32
    %0 = arith.muli %arg0, %c1_i32 : i32
    %1 = arith.addi %0, %arg1 : i32
    %c0_i32 = arith.constant 0 : i32
    %2 = arith.minsi %1, %c0_i32 : i32
    %c0_i32_0 = arith.constant 0 : i32
    %c0_i32_1 = arith.constant 0 : i32
    %c0_i32_2 = arith.constant 0 : i32
    return %c0_i32_0, %c0_i32_1, %2 : i32, i32, i32
  }
  func.func @transform_1(%arg0: i32, %arg1: i32) -> (i32, i32, i32) {
    %c0_i32 = arith.constant 0 : i32
    %c0_i32_0 = arith.constant 0 : i32
    %c0_i32_1 = arith.constant 0 : i32
    return %arg0, %c0_i32, %c0_i32_0 : i32, i32, i32
  }
}

</mosaic_0001>

<llo_original>
// kernel: tpu_custom_call.1
$region0: #{tpu_custom_call.1}
  #allocation0 [shape = 'u32[]', space=smem, size = 0x4, offset = 0x4, fixed_abs, tag = 'smem constant byte address 0x4 - core index']
  #allocation1 [shape = 'u32[144,128]{1,0:T(1,128)}', space=vmem, size = 0x12000, scoped, tag = 'internal scratch']
  #allocation2 [shape = 'f32[2,24,512]{2,1,0:T(8,128)}', space=vmem, size = 0x18000, scoped, tag = 'scratch operand']
  %s0 = inlined_call_operand.hbm [shape: f32[2,24,2048], index: 0, kind: input, shape index: {}]
  %s1 = inlined_call_operand.hbm [shape: f32[1,2,24], index: 1, kind: output, shape index: {}]
  %s2 = sld [smem:[#allocation0]]
  $region26: #{tpu_custom_call.1} parent=0
    _
  %s4 = ssub.s32 1, %s2
  %s5 = scalar_select 0, %s4, %s2
  $region1: #{tpu_custom_call.1} parent=0
    #allocation3 [shape = 'u8[393216]{0}', space=vmem, size = 0x60000, scoped, tag = 'input window, operand 0, single buffered']
    #allocation4 [shape = 's32[1]{0}', space=sflag, size = 0x4, scoped, tag = 'scoped memory for tpu_custom_call.1']
    #allocation5 [shape = 's32[1]{0}', space=sflag, size = 0x4, scoped, tag = 'scoped memory for tpu_custom_call.1']
    #allocation6 [shape = 'u8[1024]{0}', space=vmem, size = 0x400, scoped, tag = 'output window, operand 0, single buffered']
    %6 = vsyncpa [#allocation4], 0
    %7 = vsyncpa [#allocation5], 0
    // Predicated region
    $region2: #{tpu_custom_call.1} parent=1 // pred_check
      _
    $region3: #{tpu_custom_call.1} parent=1 // pred_check_branch
      %9 = sbr.rel (0) target = $region5
    $region4: #{tpu_custom_call.1} parent=1 // pred_region
      %s10 = sadd.s32 0, 0
      %p11 = scmp.lt.s32.totalorder %s10, 0
      %s12 = scalar_select %p11, %s10, 0
      %s13 = smul.u32 16, %s12
      %s15 = ssub.s32 12288, 12288
      %16 = vsyncadd [#allocation4], %s15
      %s17 = smul.addr %s13, 128
      %s18 = scalar_lea.hbm %s0, %s17
      %s19 = sshll.u32 [#allocation3], 4
      %s20 = int_to_ptr.vmem [resolvable:$true] %s19
      %25 = dma.hbm_to_vmem [thread:$0]  %s18, 12288, %s20, [#allocation4], 2048, 2048, 128
    $region5: #{tpu_custom_call.1} parent=1 // pred_fallthru
      _
    // Predicated region
    $region6: #{tpu_custom_call.1} parent=1 // pred_check
      _
    $region7: #{tpu_custom_call.1} parent=1 // pred_check_branch
      %27 = sbr.rel (0) target = $region9
    $region8: #{tpu_custom_call.1} parent=1 // pred_region
      %28 = dma.done [#allocation4], 12288
    $region9: #{tpu_custom_call.1} parent=1 // pred_fallthru
      _
    %s29 = sadd.s32 0, 0
    %p30 = scmp.lt.s32.totalorder %s29, 0
    %s31 = scalar_select %p30, %s29, 0
    %s32 = smul.u32 16, %s31
    %p33 = scmp.eq.s32.totalorder 0, 0
    // Predicated region
    $region10: #{tpu_custom_call.1} parent=1 // pred_check
      %p34 = pneg %p33
    $region11: #{tpu_custom_call.1} parent=1 // pred_check_branch
      %36 = sbr.rel (%p34) target = $region13
    $region12: #{tpu_custom_call.1} parent=1 // pred_region
      %37 = vst [vmem:[#allocation2] sm:$0xff] 0.0
      %38 = vst [vmem:[#allocation2 + $0x8] sm:$0xff] 0.0
      %39 = vst [vmem:[#allocation2 + $0x10] sm:$0xff] 0.0
      %40 = vst [vmem:[#allocation2 + $0x18] sm:$0xff] 0.0
      %41 = vst [vmem:[#allocation2 + $0x20] sm:$0xff] 0.0
      %42 = vst [vmem:[#allocation2 + $0x28] sm:$0xff] 0.0
      %43 = vst [vmem:[#allocation2 + $0x30] sm:$0xff] 0.0
      %44 = vst [vmem:[#allocation2 + $0x38] sm:$0xff] 0.0
      %45 = vst [vmem:[#allocation2 + $0x40] sm:$0xff] 0.0
      %46 = vst [vmem:[#allocation2 + $0x48] sm:$0xff] 0.0
      %47 = vst [vmem:[#allocation2 + $0x50] sm:$0xff] 0.0
      %48 = vst [vmem:[#allocation2 + $0x58] sm:$0xff] 0.0
      %49 = vst [vmem:[#allocation2 + $0x60] sm:$0xff] 0.0
      %50 = vst [vmem:[#allocation2 + $0x68] sm:$0xff] 0.0
      %51 = vst [vmem:[#allocation2 + $0x70] sm:$0xff] 0.0
      %52 = vst [vmem:[#allocation2 + $0x78] sm:$0xff] 0.0
      %53 = vst [vmem:[#allocation2 + $0x80] sm:$0xff] 0.0
      %54 = vst [vmem:[#allocation2 + $0x88] sm:$0xff] 0.0
      %55 = vst [vmem:[#allocation2 + $0x90] sm:$0xff] 0.0
      %56 = vst [vmem:[#allocation2 + $0x98] sm:$0xff] 0.0
      %57 = vst [vmem:[#allocation2 + $0xa0] sm:$0xff] 0.0
      %58 = vst [vmem:[#allocation2 + $0xa8] sm:$0xff] 0.0
      %59 = vst [vmem:[#allocation2 + $0xb0] sm:$0xff] 0.0
      %60 = vst [vmem:[#allocation2 + $0xb8] sm:$0xff] 0.0
    $region13: #{tpu_custom_call.1} parent=1 // pred_fallthru
      _
    %v61 = vld [vmem:[#allocation2] sm:$0xff]
    %v62 = vld [vmem:[#allocation2 + $0x8] sm:$0xff]
    %v63 = vld [vmem:[#allocation2 + $0x10] sm:$0xff]
    %v64 = vld [vmem:[#allocation2 + $0x18] sm:$0xff]
    %v65 = vld [vmem:[#allocation2 + $0x20] sm:$0xff]
    %v66 = vld [vmem:[#allocation2 + $0x28] sm:$0xff]
    %v67 = vld [vmem:[#allocation2 + $0x30] sm:$0xff]
    %v68 = vld [vmem:[#allocation2 + $0x38] sm:$0xff]
    %v69 = vld [vmem:[#allocation2 + $0x40] sm:$0xff]
    %v70 = vld [vmem:[#allocation2 + $0x48] sm:$0xff]
    %v71 = vld [vmem:[#allocation2 + $0x50] sm:$0xff]
    %v72 = vld [vmem:[#allocation2 + $0x58] sm:$0xff]
    %v73 = vld [vmem:[#allocation2 + $0x60] sm:$0xff]
    %v74 = vld [vmem:[#allocation2 + $0x68] sm:$0xff]
    %v75 = vld [vmem:[#allocation2 + $0x70] sm:$0xff]
    %v76 = vld [vmem:[#allocation2 + $0x78] sm:$0xff]
    %v77 = vld [vmem:[#allocation2 + $0x80] sm:$0xff]
    %v78 = vld [vmem:[#allocation2 + $0x88] sm:$0xff]
    %v79 = vld [vmem:[#allocation2 + $0x90] sm:$0xff]
    %v80 = vld [vmem:[#allocation2 + $0x98] sm:$0xff]
    %v81 = vld [vmem:[#allocation2 + $0xa0] sm:$0xff]
    %v82 = vld [vmem:[#allocation2 + $0xa8] sm:$0xff]
    %v83 = vld [vmem:[#allocation2 + $0xb0] sm:$0xff]
    %v84 = vld [vmem:[#allocation2 + $0xb8] sm:$0xff]
    %v85 = vld [vmem:[#allocation3] sm:$0xff]
    %v86 = vld [vmem:[#allocation3 + $0x8] sm:$0xff]
    %v87 = vld [vmem:[#allocation3 + $0x10] sm:$0xff]
    %v88 = vld [vmem:[#allocation3 + $0x18] sm:$0xff]
    %v89 = vld [vmem:[#allocation3 + $0x80] sm:$0xff]
    %v90 = vld [vmem:[#allocation3 + $0x88] sm:$0xff]
    %v91 = vld [vmem:[#allocation3 + $0x90] sm:$0xff]
    %v92 = vld [vmem:[#allocation3 + $0x98] sm:$0xff]
    %v93 = vld [vmem:[#allocation3 + $0x100] sm:$0xff]
    %v94 = vld [vmem:[#allocation3 + $0x108] sm:$0xff]
    %v95 = vld [vmem:[#allocation3 + $0x110] sm:$0xff]
    %v96 = vld [vmem:[#allocation3 + $0x118] sm:$0xff]
    %v97 = vld [vmem:[#allocation3 + $0x180] sm:$0xff]
    %v98 = vld [vmem:[#allocation3 + $0x188] sm:$0xff]
    %v99 = vld [vmem:[#allocation3 + $0x190] sm:$0xff]
    %v100 = vld [vmem:[#allocation3 + $0x198] sm:$0xff]
    %v101 = vld [vmem:[#allocation3 + $0x200] sm:$0xff]
    %v102 = vld [vmem:[#allocation3 + $0x208] sm:$0xff]
    %v103 = vld [vmem:[#allocation3 + $0x210] sm:$0xff]
    %v104 = vld [vmem:[#allocation3 + $0x218] sm:$0xff]
    %v105 = vld [vmem:[#allocation3 + $0x280] sm:$0xff]
    %v106 = vld [vmem:[#allocation3 + $0x288] sm:$0xff]
    %v107 = vld [vmem:[#allocation3 + $0x290] sm:$0xff]
    %v108 = vld [vmem:[#allocation3 + $0x298] sm:$0xff]
    %v109 = vadd.f32 %v61, %v85
    %v110 = vadd.f32 %v62, %v86
    %v111 = vadd.f32 %v63, %v87
    %v112 = vadd.f32 %v64, %v88
    %v113 = vadd.f32 %v65, %v89
    %v114 = vadd.f32 %v66, %v90
    %v115 = vadd.f32 %v67, %v91
    %v116 = vadd.f32 %v68, %v92
    %v117 = vadd.f32 %v69, %v93
    %v118 = vadd.f32 %v70, %v94
    %v119 = vadd.f32 %v71, %v95
    %v120 = vadd.f32 %v72, %v96
    %v121 = vadd.f32 %v73, %v97
    %v122 = vadd.f32 %v74, %v98
    %v123 = vadd.f32 %v75, %v99
    %v124 = vadd.f32 %v76, %v100
    %v125 = vadd.f32 %v77, %v101
    %v126 = vadd.f32 %v78, %v102
    %v127 = vadd.f32 %v79, %v103
    %v128 = vadd.f32 %v80, %v104
    %v129 = vadd.f32 %v81, %v105
    %v130 = vadd.f32 %v82, %v106
    %v131 = vadd.f32 %v83, %v107
    %v132 = vadd.f32 %v84, %v108
    %s133 = scalar_lea.vmem [#allocation3], 32
    %v134 = vld [vmem:[%s133] sm:$0xff]
    %v135 = vld [vmem:[%s133 + $0x8] sm:$0xff]
    %v136 = vld [vmem:[%s133 + $0x10] sm:$0xff]
    %v137 = vld [vmem:[%s133 + $0x18] sm:$0xff]
    %v138 = vld [vmem:[%s133 + $0x80] sm:$0xff]
    %v139 = vld [vmem:[%s133 + $0x88] sm:$0xff]
    %v140 = vld [vmem:[%s133 + $0x90] sm:$0xff]
    %v141 = vld [vmem:[%s133 + $0x98] sm:$0xff]
    %v142 = vld [vmem:[%s133 + $0x100] sm:$0xff]
    %v143 = vld [vmem:[%s133 + $0x108] sm:$0xff]
    %v144 = vld [vmem:[%s133 + $0x110] sm:$0xff]
    %v145 = vld [vmem:[%s133 + $0x118] sm:$0xff]
    %v146 = vld [vmem:[%s133 + $0x180] sm:$0xff]
    %v147 = vld [vmem:[%s133 + $0x188] sm:$0xff]
    %v148 = vld [vmem:[%s133 + $0x190] sm:$0xff]
    %v149 = vld [vmem:[%s133 + $0x198] sm:$0xff]
    %v150 = vld [vmem:[%s133 + $0x200] sm:$0xff]
    %v151 = vld [vmem:[%s133 + $0x208] sm:$0xff]
    %v152 = vld [vmem:[%s133 + $0x210] sm:$0xff]
    %v153 = vld [vmem:[%s133 + $0x218] sm:$0xff]
    %v154 = vld [vmem:[%s133 + $0x280] sm:$0xff]
    %v155 = vld [vmem:[%s133 + $0x288] sm:$0xff]
    %v156 = vld [vmem:[%s133 + $0x290] sm:$0xff]
    %v157 = vld [vmem:[%s133 + $0x298] sm:$0xff]
    %v158 = vadd.f32 %v109, %v134
    %v159 = vadd.f32 %v110, %v135
    %v160 = vadd.f32 %v111, %v136
    %v161 = vadd.f32 %v112, %v137
    %v162 = vadd.f32 %v113, %v138
    %v163 = vadd.f32 %v114, %v139
    %v164 = vadd.f32 %v115, %v140
    %v165 = vadd.f32 %v116, %v141
    %v166 = vadd.f32 %v117, %v142
    %v167 = vadd.f32 %v118, %v143
    %v168 = vadd.f32 %v119, %v144
    %v169 = vadd.f32 %v120, %v145
    %v170 = vadd.f32 %v121, %v146
    %v171 = vadd.f32 %v122, %v147
    %v172 = vadd.f32 %v123, %v148
    %v173 = vadd.f32 %v124, %v149
    %v174 = vadd.f32 %v125, %v150
    %v175 = vadd.f32 %v126, %v151
    %v176 = vadd.f32 %v127, %v152
    %v177 = vadd.f32 %v128, %v153
    %v178 = vadd.f32 %v129, %v154
    %v179 = vadd.f32 %v130, %v155
    %v180 = vadd.f32 %v131, %v156
    %v181 = vadd.f32 %v132, %v157
    %s182 = scalar_lea.vmem [#allocation3], 64
    %v183 = vld [vmem:[%s182] sm:$0xff]
    %v184 = vld [vmem:[%s182 + $0x8] sm:$0xff]
    %v185 = vld [vmem:[%s182 + $0x10] sm:$0xff]
    %v186 = vld [vmem:[%s182 + $0x18] sm:$0xff]
    %v187 = vld [vmem:[%s182 + $0x80] sm:$0xff]
    %v188 = vld [vmem:[%s182 + $0x88] sm:$0xff]
    %v189 = vld [vmem:[%s182 + $0x90] sm:$0xff]
    %v190 = vld [vmem:[%s182 + $0x98] sm:$0xff]
    %v191 = vld [vmem:[%s182 + $0x100] sm:$0xff]
    %v192 = vld [vmem:[%s182 + $0x108] sm:$0xff]
    %v193 = vld [vmem:[%s182 + $0x110] sm:$0xff]
    %v194 = vld [vmem:[%s182 + $0x118] sm:$0xff]
    %v195 = vld [vmem:[%s182 + $0x180] sm:$0xff]
    %v196 = vld [vmem:[%s182 + $0x188] sm:$0xff]
    %v197 = vld [vmem:[%s182 + $0x190] sm:$0xff]
    %v198 = vld [vmem:[%s182 + $0x198] sm:$0xff]
    %v199 = vld [vmem:[%s182 + $0x200] sm:$0xff]
    %v200 = vld [vmem:[%s182 + $0x208] sm:$0xff]
    %v201 = vld [vmem:[%s182 + $0x210] sm:$0xff]
    %v202 = vld [vmem:[%s182 + $0x218] sm:$0xff]
    %v203 = vld [vmem:[%s182 + $0x280] sm:$0xff]
    %v204 = vld [vmem:[%s182 + $0x288] sm:$0xff]
    %v205 = vld [vmem:[%s182 + $0x290] sm:$0xff]
    %v206 = vld [vmem:[%s182 + $0x298] sm:$0xff]
    %v207 = vadd.f32 %v158, %v183
    %v208 = vadd.f32 %v159, %v184
    %v209 = vadd.f32 %v160, %v185
    %v210 = vadd.f32 %v161, %v186
    %v211 = vadd.f32 %v162, %v187
    %v212 = vadd.f32 %v163, %v188
    %v213 = vadd.f32 %v164, %v189
    %v214 = vadd.f32 %v165, %v190
    %v215 = vadd.f32 %v166, %v191
    %v216 = vadd.f32 %v167, %v192
    %v217 = vadd.f32 %v168, %v193
    %v218 = vadd.f32 %v169, %v194
    %v219 = vadd.f32 %v170, %v195
    %v220 = vadd.f32 %v171, %v196
    %v221 = vadd.f32 %v172, %v197
    %v222 = vadd.f32 %v173, %v198
    %v223 = vadd.f32 %v174, %v199
    %v224 = vadd.f32 %v175, %v200
    %v225 = vadd.f32 %v176, %v201
    %v226 = vadd.f32 %v177, %v202
    %v227 = vadd.f32 %v178, %v203
    %v228 = vadd.f32 %v179, %v204
    %v229 = vadd.f32 %v180, %v205
    %v230 = vadd.f32 %v181, %v206
    %s231 = scalar_lea.vmem [#allocation3], 96
    %v232 = vld [vmem:[%s231] sm:$0xff]
    %v233 = vld [vmem:[%s231 + $0x8] sm:$0xff]
    %v234 = vld [vmem:[%s231 + $0x10] sm:$0xff]
    %v235 = vld [vmem:[%s231 + $0x18] sm:$0xff]
    %v236 = vld [vmem:[%s231 + $0x80] sm:$0xff]
    %v237 = vld [vmem:[%s231 + $0x88] sm:$0xff]
    %v238 = vld [vmem:[%s231 + $0x90] sm:$0xff]
    %v239 = vld [vmem:[%s231 + $0x98] sm:$0xff]
    %v240 = vld [vmem:[%s231 + $0x100] sm:$0xff]
    %v241 = vld [vmem:[%s231 + $0x108] sm:$0xff]
    %v242 = vld [vmem:[%s231 + $0x110] sm:$0xff]
    %v243 = vld [vmem:[%s231 + $0x118] sm:$0xff]
    %v244 = vld [vmem:[%s231 + $0x180] sm:$0xff]
    %v245 = vld [vmem:[%s231 + $0x188] sm:$0xff]
    %v246 = vld [vmem:[%s231 + $0x190] sm:$0xff]
    %v247 = vld [vmem:[%s231 + $0x198] sm:$0xff]
    %v248 = vld [vmem:[%s231 + $0x200] sm:$0xff]
    %v249 = vld [vmem:[%s231 + $0x208] sm:$0xff]
    %v250 = vld [vmem:[%s231 + $0x210] sm:$0xff]
    %v251 = vld [vmem:[%s231 + $0x218] sm:$0xff]
    %v252 = vld [vmem:[%s231 + $0x280] sm:$0xff]
    %v253 = vld [vmem:[%s231 + $0x288] sm:$0xff]
    %v254 = vld [vmem:[%s231 + $0x290] sm:$0xff]
    %v255 = vld [vmem:[%s231 + $0x298] sm:$0xff]
    %v256 = vadd.f32 %v207, %v232
    %v257 = vadd.f32 %v208, %v233
    %v258 = vadd.f32 %v209, %v234
    %v259 = vadd.f32 %v210, %v235
    %v260 = vadd.f32 %v211, %v236
    %v261 = vadd.f32 %v212, %v237
    %v262 = vadd.f32 %v213, %v238
    %v263 = vadd.f32 %v214, %v239
    %v264 = vadd.f32 %v215, %v240
    %v265 = vadd.f32 %v216, %v241
    %v266 = vadd.f32 %v217, %v242
    %v267 = vadd.f32 %v218, %v243
    %v268 = vadd.f32 %v219, %v244
    %v269 = vadd.f32 %v220, %v245
    %v270 = vadd.f32 %v221, %v246
    %v271 = vadd.f32 %v222, %v247
    %v272 = vadd.f32 %v223, %v248
    %v273 = vadd.f32 %v224, %v249
    %v274 = vadd.f32 %v225, %v250
    %v275 = vadd.f32 %v226, %v251
    %v276 = vadd.f32 %v227, %v252
    %v277 = vadd.f32 %v228, %v253
    %v278 = vadd.f32 %v229, %v254
    %v279 = vadd.f32 %v230, %v255
    %280 = vst [vmem:[#allocation2] sm:$0xff] %v256
    %281 = vst [vmem:[#allocation2 + $0x8] sm:$0xff] %v257
    %282 = vst [vmem:[#allocation2 + $0x10] sm:$0xff] %v258
    %283 = vst [vmem:[#allocation2 + $0x18] sm:$0xff] %v259
    %284 = vst [vmem:[#allocation2 + $0x20] sm:$0xff] %v260
    %285 = vst [vmem:[#allocation2 + $0x28] sm:$0xff] %v261
    %286 = vst [vmem:[#allocation2 + $0x30] sm:$0xff] %v262
    %287 = vst [vmem:[#allocation2 + $0x38] sm:$0xff] %v263
    %288 = vst [vmem:[#allocation2 + $0x40] sm:$0xff] %v264
    %289 = vst [vmem:[#allocation2 + $0x48] sm:$0xff] %v265
    %290 = vst [vmem:[#allocation2 + $0x50] sm:$0xff] %v266
    %291 = vst [vmem:[#allocation2 + $0x58] sm:$0xff] %v267
    %292 = vst [vmem:[#allocation2 + $0x60] sm:$0xff] %v268
    %293 = vst [vmem:[#allocation2 + $0x68] sm:$0xff] %v269
    %294 = vst [vmem:[#allocation2 + $0x70] sm:$0xff] %v270
    %295 = vst [vmem:[#allocation2 + $0x78] sm:$0xff] %v271
    %296 = vst [vmem:[#allocation2 + $0x80] sm:$0xff] %v272
    %297 = vst [vmem:[#allocation2 + $0x88] sm:$0xff] %v273
    %298 = vst [vmem:[#allocation2 + $0x90] sm:$0xff] %v274
    %299 = vst [vmem:[#allocation2 + $0x98] sm:$0xff] %v275
    %300 = vst [vmem:[#allocation2 + $0xa0] sm:$0xff] %v276
    %301 = vst [vmem:[#allocation2 + $0xa8] sm:$0xff] %v277
    %302 = vst [vmem:[#allocation2 + $0xb0] sm:$0xff] %v278
    %303 = vst [vmem:[#allocation2 + $0xb8] sm:$0xff] %v279
    // Predicated region
    $region14: #{tpu_custom_call.1} parent=1 // pred_check
      %p304 = pneg %p33
    $region15: #{tpu_custom_call.1} parent=1 // pred_check_branch
      %306 = sbr.rel (%p304) target = $region17
    $region16: #{tpu_custom_call.1} parent=1 // pred_region
      %v307 = vld [vmem:[#allocation2] sm:$0xff]
      %v308 = vld [vmem:[#allocation2 + $0x8] sm:$0xff]
      %v309 = vld [vmem:[#allocation2 + $0x10] sm:$0xff]
      %v310 = vld [vmem:[#allocation2 + $0x18] sm:$0xff]
      %v311 = vld [vmem:[#allocation2 + $0x20] sm:$0xff]
      %v312 = vld [vmem:[#allocation2 + $0x28] sm:$0xff]
      %v313 = vld [vmem:[#allocation2 + $0x30] sm:$0xff]
      %v314 = vld [vmem:[#allocation2 + $0x38] sm:$0xff]
      %v315 = vld [vmem:[#allocation2 + $0x40] sm:$0xff]
      %v316 = vld [vmem:[#allocation2 + $0x48] sm:$0xff]
      %v317 = vld [vmem:[#allocation2 + $0x50] sm:$0xff]
      %v318 = vld [vmem:[#allocation2 + $0x58] sm:$0xff]
      %v319 = vld [vmem:[#allocation2 + $0x60] sm:$0xff]
      %v320 = vld [vmem:[#allocation2 + $0x68] sm:$0xff]
      %v321 = vld [vmem:[#allocation2 + $0x70] sm:$0xff]
      %v322 = vld [vmem:[#allocation2 + $0x78] sm:$0xff]
      %v323 = vld [vmem:[#allocation2 + $0x80] sm:$0xff]
      %v324 = vld [vmem:[#allocation2 + $0x88] sm:$0xff]
      %v325 = vld [vmem:[#allocation2 + $0x90] sm:$0xff]
      %v326 = vld [vmem:[#allocation2 + $0x98] sm:$0xff]
      %v327 = vld [vmem:[#allocation2 + $0xa0] sm:$0xff]
      %v328 = vld [vmem:[#allocation2 + $0xa8] sm:$0xff]
      %v329 = vld [vmem:[#allocation2 + $0xb0] sm:$0xff]
      %v330 = vld [vmem:[#allocation2 + $0xb8] sm:$0xff]
      %v331 = vadd.f32 %v307, %v308
      %v332 = vadd.f32 %v331, %v309
      %v333 = vadd.f32 %v332, %v310
      %334 = vadd.xlane.f32.xlu0 %v333
      %v335 = vpop.xlane.xlu0 %334
      %v336 = vadd.f32 %v311, %v312
      %v337 = vadd.f32 %v336, %v313
      %v338 = vadd.f32 %v337, %v314
      %339 = vadd.xlane.f32.xlu0 %v338
      %v340 = vpop.xlane.xlu0 %339
      %v341 = vadd.f32 %v315, %v316
      %v342 = vadd.f32 %v341, %v317
      %v343 = vadd.f32 %v342, %v318
      %344 = vadd.xlane.f32.xlu0 %v343
      %v345 = vpop.xlane.xlu0 %344
      %v346 = vadd.f32 %v319, %v320
      %v347 = vadd.f32 %v346, %v321
      %v348 = vadd.f32 %v347, %v322
      %349 = vadd.xlane.f32.xlu0 %v348
      %v350 = vpop.xlane.xlu0 %349
      %v351 = vadd.f32 %v323, %v324
      %v352 = vadd.f32 %v351, %v325
      %v353 = vadd.f32 %v352, %v326
      %354 = vadd.xlane.f32.xlu0 %v353
      %v355 = vpop.xlane.xlu0 %354
      %v356 = vadd.f32 %v327, %v328
      %v357 = vadd.f32 %v356, %v329
      %v358 = vadd.f32 %v357, %v330
      %359 = vadd.xlane.f32.xlu0 %v358
      %v360 = vpop.xlane.xlu0 %359
      %v367 = vlaneseq
      %v368 = vand.u32 %v367, 127
      %v369 = vlaneseq
      %v370 = vshrl.u32 %v369, 7
      %v371 = vsub.s32 %v368, %v370
      %v372 = vrot.slane %v335, %v371
      %v373 = vadd.s32 %v368, 4294967288
      %v374 = vlaneseq
      %v375 = vshrl.u32 %v374, 7
      %v376 = vsub.s32 %v373, %v375
      %v377 = vrot.slane %v340, %v376
      %vm378 = vcmask 130112
      %v379 = vsel %vm378, %v377, %v372
      %v380 = vadd.s32 %v368, 4294967280
      %v381 = vlaneseq
      %v382 = vshrl.u32 %v381, 7
      %v383 = vsub.s32 %v380, %v382
      %v384 = vrot.slane %v345, %v383
      %vm385 = vcmask 195712
      %v386 = vsel %vm385, %v384, %v379
      %v387 = vlaneseq
      %v388 = vshrl.u32 %v387, 7
      %v389 = vsub.s32 %v368, %v388
      %v390 = vrot.slane %v350, %v389
      %v391 = vlaneseq
      %v392 = vshrl.u32 %v391, 7
      %v393 = vsub.s32 %v373, %v392
      %v394 = vrot.slane %v355, %v393
      %v395 = vsel %vm378, %v394, %v390
      %v396 = vlaneseq
      %v397 = vshrl.u32 %v396, 7
      %v398 = vsub.s32 %v380, %v397
      %v399 = vrot.slane %v360, %v398
      %v400 = vsel %vm385, %v399, %v395
      %vm401 = vcmask 1041409
      %v402 = vsel %vm401, %v400, %v386
      %vm404 = vcmask 189440
      %405 = vst.msk [vmem:[#allocation6] sm:$0x3] %vm404, %v402
    $region17: #{tpu_custom_call.1} parent=1 // pred_fallthru
      _
    // Predicated region
    $region18: #{tpu_custom_call.1} parent=1 // pred_check
      _
    $region19: #{tpu_custom_call.1} parent=1 // pred_check_branch
      %407 = sbr.rel (0) target = $region21
    $region20: #{tpu_custom_call.1} parent=1 // pred_region
      %s409 = ssub.s32 32, 32
      %410 = vsyncadd [#allocation5], %s409
      %s412 = sshll.u32 [#allocation6], 4
      %s413 = int_to_ptr.vmem [resolvable:$true] %s412
      %415 = dma.vmem_to_hbm [thread:$0]  %s413, 32, %s1, [#allocation5]
    $region21: #{tpu_custom_call.1} parent=1 // pred_fallthru
      _
    // Predicated region
    $region22: #{tpu_custom_call.1} parent=1 // pred_check
      _
    $region23: #{tpu_custom_call.1} parent=1 // pred_check_branch
      %417 = sbr.rel (0) target = $region25
    $region24: #{tpu_custom_call.1} parent=1 // pred_region
      %418 = dma.done [#allocation5], 32
    $region25: #{tpu_custom_call.1} parent=1 // pred_fallthru
      _
    %419 = vsyncpa [#allocation4], 1
    %420 = vsyncpa [#allocation5], 1

</llo_original>
